<compile_context>
chip_gen: v7x
topology: tpu7x:2x2x1
jax: 0.10.0
libtpu: 0.0.40
codegen_flags: <defaults>
</compile_context>

<pallas_src>
import functools
import math

import jax
import jax.numpy as jnp
from jax import lax
from jax.experimental import pallas as pl
from jax.experimental.pallas import tpu as pltpu

EPS_BN = 1e-5
NEG_INF = -1e30


def _elu(z):
    # exp only ever sees non-positive values (safe if this is differentiated).
    return jnp.where(z > 0, z, jnp.exp(jnp.minimum(z, 0.0)) - 1.0)


def _apply_act(z, act):
    if act == "relu":
        return jnp.maximum(z, 0.0)
    if act == "elu":
        return _elu(z)
    return z


# ----------------------------- Pallas kernels ------------------------------

def _linear_kernel(x_ref, w_ref, b_ref, o_ref, *, act):
    # TODO(synk): operands could be pre-cast to bf16 (f32 accumulate) on
    # v5e/v6e/v7x for 2x MXU rate; kept f32 to match PyTorch numerics exactly.
    y = jnp.dot(x_ref[...], w_ref[...], preferred_element_type=jnp.float32)
    o_ref[...] = _apply_act(y + b_ref[...], act)


def pallas_linear(x, w, b, act=None, row_tile=512):
    """Row-tiled fused linear (+activation).  No residual/zeros input."""
    n, fin = x.shape
    fout = w.shape[1]
    tr = row_tile if (n % row_tile == 0) else n   # fall back to whole array
    return pl.pallas_call(
        functools.partial(_linear_kernel, act=act),
        out_shape=jax.ShapeDtypeStruct((n, fout), jnp.float32),
        grid_spec=pltpu.PrefetchScalarGridSpec(
            num_scalar_prefetch=0,
            grid=(n // tr,),
            in_specs=[pl.BlockSpec((tr, fin), lambda i: (i, 0)),
                      pl.BlockSpec((fin, fout), lambda i: (0, 0)),
                      pl.BlockSpec((1, fout), lambda i: (0, 0))],
            out_specs=pl.BlockSpec((tr, fout), lambda i: (i, 0))),
        compiler_params=pltpu.CompilerParams(
            dimension_semantics=("parallel",)),
    )(x, w, b.reshape(1, fout))


def _resblock_kernel(x_ref, w1_ref, b1_ref, w2_ref, b2_ref, o_ref):
    # BatchNorm1d in (default) training mode with gamma=1, beta=0; batch
    # statistics computed over all rows (so this kernel is not row-tiled).
    x = x_ref[...]
    h = jnp.dot(x, w1_ref[...], preferred_element_type=jnp.float32) + b1_ref[...]
    mu = jnp.mean(h, axis=0, keepdims=True)
    var = jnp.maximum(jnp.mean(h * h, axis=0, keepdims=True) - mu * mu, 0.0)
    h = jnp.maximum((h - mu) * lax.rsqrt(var + EPS_BN), 0.0)
    h2 = jnp.dot(h, w2_ref[...], preferred_element_type=jnp.float32) + b2_ref[...]
    mu2 = jnp.mean(h2, axis=0, keepdims=True)
    var2 = jnp.maximum(jnp.mean(h2 * h2, axis=0, keepdims=True) - mu2 * mu2, 0.0)
    h2 = (h2 - mu2) * lax.rsqrt(var2 + EPS_BN)
    o_ref[...] = jnp.maximum(h2 + x, 0.0)


def pallas_resblock(x, p):
    n, f = x.shape
    return pl.pallas_call(
        _resblock_kernel,
        out_shape=jax.ShapeDtypeStruct((n, f), jnp.float32),
    )(x, p["w1"], p["b1"].reshape(1, f), p["w2"], p["b2"].reshape(1, f))


def _segment_softmax_agg(score, values, m):
    """score (R,1), values (R,D), m (R,S) one-hot -> (S,D) segment attention.

    Per-row segment statistics are fetched with MXU NT dots against the (1,S)
    stats (m is exactly one-hot per row, so the dot is an exact selection)."""
    nt = (((1,), (1,)), ((), ()))
    seg_max = jnp.max(jnp.where(m > 0, score, NEG_INF), axis=0, keepdims=True)   # (1,S)
    row_max = lax.dot_general(m, seg_max, nt,
                              preferred_element_type=jnp.float32)                # (R,1)
    p = jnp.exp(score - row_max)                                                 # (R,1)
    seg_sum = jnp.sum(m * p, axis=0, keepdims=True)                              # (1,S)
    row_sum = lax.dot_general(m, seg_sum, nt,
                              preferred_element_type=jnp.float32)                # (R,1)
    alpha = p / row_sum
    return jnp.dot(m.T, alpha * values, preferred_element_type=jnp.float32)      # (S,D)


def _edge_attention_kernel(*refs, scale, act, has_edge):
    if has_edge:
        q_ref, k_ref, v_ref, ea_ref, we_ref, m_ref, skip_ref, o_ref = refs
    else:
        q_ref, k_ref, v_ref, m_ref, skip_ref, o_ref = refs
    k = k_ref[...]
    v = v_ref[...]
    if has_edge:
        e = jnp.dot(ea_ref[...], we_ref[...], preferred_element_type=jnp.float32)
        k = k + e
        v = v + e
    score = jnp.sum(q_ref[...] * k, axis=1, keepdims=True) * scale   # stays in VMEM
    agg = _segment_softmax_agg(score, v, m_ref[...])
    o_ref[...] = _apply_act(agg + skip_ref[...], act)


def pallas_edge_attention(q_d, k_e, v_e, m, skip, scale, act,
                          edge_attr=None, we=None):
    n, d = skip.shape
    has_edge = edge_attr is not None
    args = [q_d, k_e, v_e]
    if has_edge:
        args += [edge_attr, we]
    args += [m, skip]
    return pl.pallas_call(
        functools.partial(_edge_attention_kernel, scale=scale, act=act,
                          has_edge=has_edge),
        out_shape=jax.ShapeDtypeStruct((n, d), jnp.float32),
    )(*args)


def _global_attention_kernel(x_ref, w1_ref, b1_ref, w2_ref, b2_ref, m_ref, o_ref):
    # gate_nn = Linear -> ReLU -> Linear(1), softmax per segment, scatter-add.
    x = x_ref[...]
    h = jnp.maximum(
        jnp.dot(x, w1_ref[...], preferred_element_type=jnp.float32) + b1_ref[...],
        0.0)
    gate = jnp.dot(h, w2_ref[...], preferred_element_type=jnp.float32) + b2_ref[...]
    o_ref[...] = _segment_softmax_agg(gate, x, m_ref[...])


def pallas_global_attention(x, m, p):
    s_num = m.shape[1]
    d = x.shape[1]
    return pl.pallas_call(
        _global_attention_kernel,
        out_shape=jax.ShapeDtypeStruct((s_num, d), jnp.float32),
    )(x, p["w1"], p["b1"].reshape(1, -1), p["w2"], p["b2"].reshape(1, -1), m)


def _mlp_heads_rmse_kernel(x_ref, w1, b1, w2, b2, w3, b3, w4, b4, y_ref,
                           pred_ref, loss_ref):
    # All 6 target heads run together: layer-1 weights are concatenated along
    # the output axis, later layers are block-diagonal, so one matmul chain
    # produces a (G, 6) prediction slab plus the 6 RMSE losses.
    h = _elu(jnp.dot(x_ref[...], w1[...], preferred_element_type=jnp.float32) + b1[...])
    h = _elu(jnp.dot(h, w2[...], preferred_element_type=jnp.float32) + b2[...])
    h = _elu(jnp.dot(h, w3[...], preferred_element_type=jnp.float32) + b3[...])
    pred = jnp.dot(h, w4[...], preferred_element_type=jnp.float32) + b4[...]
    pred_ref[...] = pred
    d = pred - y_ref[...]
    loss_ref[...] = jnp.sqrt(jnp.mean(d * d, axis=0, keepdims=True))


def pallas_mlp_heads_rmse(x, y, p):
    g = x.shape[0]
    n_t = y.shape[1]
    return pl.pallas_call(
        _mlp_heads_rmse_kernel,
        out_shape=(jax.ShapeDtypeStruct((g, n_t), jnp.float32),
                   jax.ShapeDtypeStruct((1, n_t), jnp.float32)),
    )(x, p["w1"], p["b1"].reshape(1, -1), p["w2"], p["b2"].reshape(1, -1),
      p["w3"], p["b3"].reshape(1, -1), p["w4"], p["b4"].reshape(1, -1), y)


# ------------------------------ model pieces -------------------------------

def transformer_conv(x, edge_index, p, edge_attr=None, act=None):
    """PyG TransformerConv (heads=1, concat=True, beta=False, root_weight=True)."""
    n = x.shape[0]
    d = p["d"]
    # Fused q|k|v|skip projection: one (F, 4D)=*x256 matmul instead of 4.
    qkvs = pallas_linear(x, p["w_qkvs"], p["b_qkvs"])
    src, dst = edge_index[0], edge_index[1]
    # TODO(synk): per-edge gathers stay in plain JAX glue; a scalar-prefetch
    # (PrefetchScalarGridSpec + pl.Element) gather would keep rows in VMEM.
    kv_e = qkvs[src, d:3 * d]          # single gather of [k|v]
    k_e = kv_e[:, :d]
    v_e = kv_e[:, d:]
    q_d = qkvs[dst, :d]
    skip = qkvs[:, 3 * d:]
    # TODO(synk): dense one-hot membership is O(E*N); replace with
    # segment-sorted rows + scalar-prefetched offsets at realistic graph sizes.
    m = jax.nn.one_hot(dst, n, dtype=jnp.float32)
    return pallas_edge_attention(q_d, k_e, v_e, m, skip, 1.0 / math.sqrt(d), act,
                                 edge_attr=edge_attr, we=p.get("we"))


def global_attention(x, seg_ids, num_segments, p):
    m = jax.nn.one_hot(seg_ids, num_segments, dtype=jnp.float32)
    return pallas_global_attention(x, m, p)


def hier_forward(params, data):
    x = data["x"]
    edge_index = data["edge_index"]
    edge_attr = data["edge_attr"]

    out = pallas_resblock(x, params["res1"])
    out = transformer_conv(out, edge_index, params["conv_first"],
                           edge_attr=edge_attr, act="elu")
    out = pallas_resblock(out, params["res2"])
    out = transformer_conv(out, edge_index, params["conv_2"],
                           edge_attr=edge_attr, act=None)
    out = global_attention(out, data["cfg_select"], data["num_bbs"],
                           params["gate_nn"])
    out = pallas_resblock(out, params["res3"])
    out = transformer_conv(out, data["cfg_edge_index"], params["bb_conv"],
                           edge_attr=None, act=None)
    out = global_attention(out, data["bb_batch"], data["num_graphs"],
                           params["bb_gate_nn"])
    out_embed = pallas_resblock(out, params["res4"])

    # All 6 heads + all 6 RMSE losses in a single kernel.
    pred, losses = pallas_mlp_heads_rmse(out_embed, data["y"], params["mlps"])

    targets = ["LUTs", "FFs", "BRAMs", "DSPs", "clock", "latency"]
    out_dict = {t: pred[:, i:i + 1] for i, t in enumerate(targets)}
    loss_dict = {t: losses[0, i] for i, t in enumerate(targets)}
    total_loss = jnp.sum(losses)
    return out_dict, total_loss, loss_dict


# ------------------------------- parameters --------------------------------

def _init_linear(key, fin, fout):
    std = math.sqrt(2.0 / (fin + fout)) * math.sqrt(2.0)  # xavier, gain('relu')
    w = jax.random.normal(key, (fin, fout), jnp.float32) * std
    b = jnp.zeros((fout,), jnp.float32)
    return w, b


def _block_diag(blocks):
    rows = sum(b.shape[0] for b in blocks)
    cols = sum(b.shape[1] for b in blocks)
    out = jnp.zeros((rows, cols), jnp.float32)
    r = c = 0
    for b in blocks:
        out = out.at[r:r + b.shape[0], c:c + b.shape[1]].set(b)
        r += b.shape[0]
        c += b.shape[1]
    return out


def init_hier_params(key, in_channels, D=64, edge_dim=7):
    keys = iter(jax.random.split(key, 128))
    lin = lambda fin, fout: _init_linear(next(keys), fin, fout)

    def tconv(fin, fout, has_edge):
        wq, bq = lin(fin, fout)
        wk, bk = lin(fin, fout)
        wv, bv = lin(fin, fout)
        ws, bs = lin(fin, fout)
        d = {"d": fout,
             "w_qkvs": jnp.concatenate([wq, wk, wv, ws], axis=1),
             "b_qkvs": jnp.concatenate([bq, bk, bv, bs], axis=0)}
        if has_edge:
            d["we"], _ = lin(edge_dim, fout)    # lin_edge has no bias
        return d

    def gate():
        w1, b1 = lin(D, D)
        w2, b2 = lin(D, 1)
        return {"w1": w1, "b1": b1, "w2": w2, "b2": b2}

    def res(f):
        w1, b1 = lin(f, f)
        w2, b2 = lin(f, f)
        return {"w1": w1, "b1": b1, "w2": w2, "b2": b2}

    p = {
        "conv_first": tconv(in_channels, D, True),
        "conv_2": tconv(D, D, True),
        "bb_conv": tconv(D, D, False),
        "gate_nn": gate(),
        "bb_gate_nn": gate(),
        "res1": res(in_channels),
        "res2": res(D),
        "res3": res(D),
        "res4": res(D),
    }

    # 6 per-target MLP heads (D -> D/2 -> D/4 -> D/8 -> 1, ELU between).
    # Stacked: layer-1 weights concatenated along the output axis, deeper
    # layers block-diagonal -> mathematically identical to 6 independent heads.
    hidden = [D // 2, D // 4, D // 8]                    # D == 64 branch
    dims = [D] + hidden + [1]
    heads = [[lin(dims[i], dims[i + 1]) for i in range(len(dims) - 1)]
             for _ in range(6)]
    p["mlps"] = {
        "w1": jnp.concatenate([h[0][0] for h in heads], axis=1),
        "b1": jnp.concatenate([h[0][1] for h in heads], axis=0),
        "w2": _block_diag([h[1][0] for h in heads]),
        "b2": jnp.concatenate([h[1][1] for h in heads], axis=0),
        "w3": _block_diag([h[2][0] for h in heads]),
        "b3": jnp.concatenate([h[2][1] for h in heads], axis=0),
        "w4": _block_diag([h[3][0] for h in heads]),
        "b4": jnp.concatenate([h[3][1] for h in heads], axis=0),
    }
    return p


# ---------------------------------- main ------------------------------------

if __name__ == "__main__":
    C_IN, D, EDGE_DIM = 16, 64, 7
    N, E = 16, 32        # nodes / edges of the instruction graph
    NB, EB = 8, 16       # basic blocks / cfg edges
    G = 2                # graphs in the batch

    key = jax.random.PRNGKey(0)
    k1, k2, k3, k4, k5, k6, kp = jax.random.split(key, 7)

    x = jax.random.normal(k1, (N, C_IN), jnp.float32)
    edge_index = jax.random.randint(k2, (2, E), 0, N)
    edge_attr = jax.random.normal(k3, (E, EDGE_DIM), jnp.float32)
    cfg_select = jnp.sort(jax.random.randint(k4, (N,), 0, NB))       # node -> bb
    cfg_edge_index = jax.random.randint(k5, (2, EB), 0, NB)
    bb_batch = jnp.concatenate([jnp.zeros(NB // 2, jnp.int32),
                                jnp.ones(NB - NB // 2, jnp.int32)])  # bb -> graph
    y = jax.random.normal(k6, (G, 6), jnp.float32)

    data = {
        "x": x,
        "edge_index": edge_index,
        "edge_attr": edge_attr,
        "cfg_select": cfg_select,
        "cfg_edge_index": cfg_edge_index,
        "bb_batch": bb_batch,
        "y": y,
        "num_bbs": NB,
        "num_graphs": G,
    }

    params = init_hier_params(kp, C_IN, D, EDGE_DIM)

    out_dict, total_loss, loss_dict = hier_forward(params, data)
    jax.block_until_ready(total_loss)
    for v in out_dict.values():
        jax.block_until_ready(v)

    print("KERNEL_OK")
</pallas_src>

<mosaic_0001>
module attributes {stable_mosaic.version = 11 : i64} {
  func.func @_resblock_kernel(%arg0: memref<16x16xf32, #tpu.memory_space<vmem>>, %arg1: memref<16x16xf32, #tpu.memory_space<vmem>>, %arg2: memref<1x16xf32, #tpu.memory_space<vmem>>, %arg3: memref<16x16xf32, #tpu.memory_space<vmem>>, %arg4: memref<1x16xf32, #tpu.memory_space<vmem>>, %arg5: memref<16x16xf32, #tpu.memory_space<vmem>>) attributes {dimension_semantics = [], scalar_prefetch = 0 : i64, scratch_operands = 0 : i64, tpu.core_type = #tpu.core_type<tc>} {
    %c0 = arith.constant 0 : index
    %c0_0 = arith.constant 0 : index
    %0 = vector.load %arg0[%c0, %c0_0] : memref<16x16xf32, #tpu.memory_space<vmem>>, vector<16x16xf32>
    %c0_1 = arith.constant 0 : index
    %c0_2 = arith.constant 0 : index
    %1 = vector.load %arg1[%c0_1, %c0_2] : memref<16x16xf32, #tpu.memory_space<vmem>>, vector<16x16xf32>
    %cst = arith.constant dense<0.000000e+00> : vector<16x16xf32>
    %2 = tpu.matmul %0, %1, %cst {dimension_numbers = #tpu.dot_dimension_numbers<[1], [0], [0], [1], [0, 0, 1, 1], [], []>} : vector<16x16xf32>, vector<16x16xf32>, vector<16x16xf32> -> vector<16x16xf32>
    %c0_3 = arith.constant 0 : index
    %c0_4 = arith.constant 0 : index
    %3 = vector.load %arg2[%c0_3, %c0_4] : memref<1x16xf32, #tpu.memory_space<vmem>>, vector<1x16xf32>
    %4 = vector.broadcast %3 : vector<1x16xf32> to vector<16x16xf32>
    %5 = arith.addf %2, %4 : vector<16x16xf32>
    %cst_5 = arith.constant dense<0.000000e+00> : vector<16xf32>
    %6 = vector.multi_reduction <add>, %5, %cst_5 [0] : vector<16x16xf32> to vector<16xf32>
    %7 = vector.shape_cast %6 : vector<16xf32> to vector<1x16xf32>
    %cst_6 = arith.constant 1.600000e+01 : f32
    %8 = vector.broadcast %cst_6 : f32 to vector<1x16xf32>
    %9 = arith.divf %7, %8 : vector<1x16xf32>
    %10 = arith.mulf %5, %5 : vector<16x16xf32>
    %cst_7 = arith.constant dense<0.000000e+00> : vector<16xf32>
    %11 = vector.multi_reduction <add>, %10, %cst_7 [0] : vector<16x16xf32> to vector<16xf32>
    %12 = vector.shape_cast %11 : vector<16xf32> to vector<1x16xf32>
    %cst_8 = arith.constant 1.600000e+01 : f32
    %13 = vector.broadcast %cst_8 : f32 to vector<1x16xf32>
    %14 = arith.divf %12, %13 : vector<1x16xf32>
    %15 = arith.mulf %9, %9 : vector<1x16xf32>
    %16 = arith.subf %14, %15 : vector<1x16xf32>
    %cst_9 = arith.constant 0.000000e+00 : f32
    %17 = vector.broadcast %cst_9 : f32 to vector<1x16xf32>
    %18 = arith.maximumf %16, %17 : vector<1x16xf32>
    %19 = vector.broadcast %9 : vector<1x16xf32> to vector<16x16xf32>
    %20 = arith.subf %5, %19 : vector<16x16xf32>
    %cst_10 = arith.constant 9.99999974E-6 : f32
    %21 = vector.broadcast %cst_10 : f32 to vector<1x16xf32>
    %22 = arith.addf %18, %21 : vector<1x16xf32>
    %23 = math.rsqrt %22 : vector<1x16xf32>
    %24 = vector.broadcast %23 : vector<1x16xf32> to vector<16x16xf32>
    %25 = arith.mulf %20, %24 : vector<16x16xf32>
    %cst_11 = arith.constant 0.000000e+00 : f32
    %26 = vector.broadcast %cst_11 : f32 to vector<16x16xf32>
    %27 = arith.maximumf %25, %26 : vector<16x16xf32>
    %c0_12 = arith.constant 0 : index
    %c0_13 = arith.constant 0 : index
    %28 = vector.load %arg3[%c0_12, %c0_13] : memref<16x16xf32, #tpu.memory_space<vmem>>, vector<16x16xf32>
    %cst_14 = arith.constant dense<0.000000e+00> : vector<16x16xf32>
    %29 = tpu.matmul %27, %28, %cst_14 {dimension_numbers = #tpu.dot_dimension_numbers<[1], [0], [0], [1], [0, 0, 1, 1], [], []>} : vector<16x16xf32>, vector<16x16xf32>, vector<16x16xf32> -> vector<16x16xf32>
    %c0_15 = arith.constant 0 : index
    %c0_16 = arith.constant 0 : index
    %30 = vector.load %arg4[%c0_15, %c0_16] : memref<1x16xf32, #tpu.memory_space<vmem>>, vector<1x16xf32>
    %31 = vector.broadcast %30 : vector<1x16xf32> to vector<16x16xf32>
    %32 = arith.addf %29, %31 : vector<16x16xf32>
    %cst_17 = arith.constant dense<0.000000e+00> : vector<16xf32>
    %33 = vector.multi_reduction <add>, %32, %cst_17 [0] : vector<16x16xf32> to vector<16xf32>
    %34 = vector.shape_cast %33 : vector<16xf32> to vector<1x16xf32>
    %cst_18 = arith.constant 1.600000e+01 : f32
    %35 = vector.broadcast %cst_18 : f32 to vector<1x16xf32>
    %36 = arith.divf %34, %35 : vector<1x16xf32>
    %37 = arith.mulf %32, %32 : vector<16x16xf32>
    %cst_19 = arith.constant dense<0.000000e+00> : vector<16xf32>
    %38 = vector.multi_reduction <add>, %37, %cst_19 [0] : vector<16x16xf32> to vector<16xf32>
    %39 = vector.shape_cast %38 : vector<16xf32> to vector<1x16xf32>
    %cst_20 = arith.constant 1.600000e+01 : f32
    %40 = vector.broadcast %cst_20 : f32 to vector<1x16xf32>
    %41 = arith.divf %39, %40 : vector<1x16xf32>
    %42 = arith.mulf %36, %36 : vector<1x16xf32>
    %43 = arith.subf %41, %42 : vector<1x16xf32>
    %cst_21 = arith.constant 0.000000e+00 : f32
    %44 = vector.broadcast %cst_21 : f32 to vector<1x16xf32>
    %45 = arith.maximumf %43, %44 : vector<1x16xf32>
    %46 = vector.broadcast %36 : vector<1x16xf32> to vector<16x16xf32>
    %47 = arith.subf %32, %46 : vector<16x16xf32>
    %cst_22 = arith.constant 9.99999974E-6 : f32
    %48 = vector.broadcast %cst_22 : f32 to vector<1x16xf32>
    %49 = arith.addf %45, %48 : vector<1x16xf32>
    %50 = math.rsqrt %49 : vector<1x16xf32>
    %51 = vector.broadcast %50 : vector<1x16xf32> to vector<16x16xf32>
    %52 = arith.mulf %47, %51 : vector<16x16xf32>
    %53 = arith.addf %52, %0 : vector<16x16xf32>
    %cst_23 = arith.constant 0.000000e+00 : f32
    %54 = vector.broadcast %cst_23 : f32 to vector<16x16xf32>
    %55 = arith.maximumf %53, %54 : vector<16x16xf32>
    %c0_24 = arith.constant 0 : index
    %c0_25 = arith.constant 0 : index
    %56 = vector.load %arg5[%c0_24, %c0_25] : memref<16x16xf32, #tpu.memory_space<vmem>>, vector<16x16xf32>
    tpu.vector_store %arg5[%c0_24, %c0_25], %55 {strides = array<i32>} : memref<16x16xf32, #tpu.memory_space<vmem>>, vector<16x16xf32>,
    return
  }
}

</mosaic_0001>

<llo_original>
// kernel: tpu_custom_call.1
$region0: #{tpu_custom_call.1}
  #allocation0 [shape = 'u32[]', space=smem, size = 0x4, offset = 0x4, fixed_abs, tag = 'smem constant byte address 0x4 - core index']
  #allocation1 [shape = 'u32[144,128]{1,0:T(1,128)}', space=vmem, size = 0x12000, scoped, tag = 'internal scratch']
  %s0 = inlined_call_operand.hbm [shape: f32[16,16], index: 0, kind: input, shape index: {}]
  %s1 = inlined_call_operand.hbm [shape: f32[16,16], index: 1, kind: input, shape index: {}]
  %s2 = inlined_call_operand.vmem [shape: f32[1,16], index: 2, kind: input, shape index: {}]
  %s3 = inlined_call_operand.hbm [shape: f32[16,16], index: 3, kind: input, shape index: {}]
  %s4 = inlined_call_operand.vmem [shape: f32[1,16], index: 4, kind: input, shape index: {}]
  %s5 = inlined_call_operand.hbm [shape: f32[16,16], index: 5, kind: output, shape index: {}]
  %s6 = sld [smem:[#allocation0]]
  $region42: #{tpu_custom_call.1} parent=0
    _
  %s8 = ssub.s32 1, %s6
  %s9 = scalar_select 0, %s8, %s6
  $region1: #{tpu_custom_call.1} parent=0
    #allocation2 [shape = 'u8[8192]{0}', space=vmem, size = 0x2000, scoped, tag = 'input window, operand 0, single buffered']
    #allocation3 [shape = 's32[1]{0}', space=sflag, size = 0x4, scoped, tag = 'scoped memory for tpu_custom_call.1']
    #allocation4 [shape = 's32[1]{0}', space=sflag, size = 0x4, scoped, tag = 'scoped memory for tpu_custom_call.1']
    #allocation5 [shape = 'u8[8192]{0}', space=vmem, size = 0x2000, scoped, tag = 'input window, operand 1, single buffered']
    #allocation6 [shape = 's32[1]{0}', space=sflag, size = 0x4, scoped, tag = 'scoped memory for tpu_custom_call.1']
    #allocation7 [shape = 'u8[8192]{0}', space=vmem, size = 0x2000, scoped, tag = 'input window, operand 3, single buffered']
    #allocation8 [shape = 'u8[8192]{0}', space=vmem, size = 0x2000, scoped, tag = 'output window, operand 0, single buffered']
    %10 = vsyncpa [#allocation3], 0
    %11 = vsyncpa [#allocation6], 0
    %12 = vsyncpa [#allocation4], 0
    // Predicated region
    $region2: #{tpu_custom_call.1} parent=1 // pred_check
      _
    $region3: #{tpu_custom_call.1} parent=1 // pred_check_branch
      %14 = sbr.rel (0) target = $region5
    $region4: #{tpu_custom_call.1} parent=1 // pred_region
      %s16 = ssub.s32 256, 256
      %17 = vsyncadd [#allocation3], %s16
      %s18 = sshll.u32 [#allocation2], 4
      %s19 = int_to_ptr.vmem [resolvable:$true] %s18
      %24 = dma.hbm_to_vmem [thread:$0]  %s0, 256, %s19, [#allocation3], 128, 128, 8
    $region5: #{tpu_custom_call.1} parent=1 // pred_fallthru
      _
    // Predicated region
    $region6: #{tpu_custom_call.1} parent=1 // pred_check
      _
    $region7: #{tpu_custom_call.1} parent=1 // pred_check_branch
      %26 = sbr.rel (0) target = $region9
    $region8: #{tpu_custom_call.1} parent=1 // pred_region
      %s28 = ssub.s32 256, 256
      %29 = vsyncadd [#allocation6], %s28
      %s30 = sshll.u32 [#allocation5], 4
      %s31 = int_to_ptr.vmem [resolvable:$true] %s30
      %36 = dma.hbm_to_vmem [thread:$0]  %s1, 256, %s31, [#allocation6], 128, 128, 8
    $region9: #{tpu_custom_call.1} parent=1 // pred_fallthru
      _
    // Predicated region
    $region10: #{tpu_custom_call.1} parent=1 // pred_check
      _
    $region11: #{tpu_custom_call.1} parent=1 // pred_check_branch
      %38 = sbr.rel (0) target = $region13
    $region12: #{tpu_custom_call.1} parent=1 // pred_region
      _
    $region13: #{tpu_custom_call.1} parent=1 // pred_fallthru
      _
    // Predicated region
    $region14: #{tpu_custom_call.1} parent=1 // pred_check
      _
    $region15: #{tpu_custom_call.1} parent=1 // pred_check_branch
      %40 = sbr.rel (0) target = $region17
    $region16: #{tpu_custom_call.1} parent=1 // pred_region
      %s42 = ssub.s32 256, 256
      %43 = vsyncadd [#allocation6], %s42
      %s44 = sshll.u32 [#allocation7], 4
      %s45 = int_to_ptr.vmem [resolvable:$true] %s44
      %50 = dma.hbm_to_vmem [thread:$0]  %s3, 256, %s45, [#allocation6], 128, 128, 8
    $region17: #{tpu_custom_call.1} parent=1 // pred_fallthru
      _
    // Predicated region
    $region18: #{tpu_custom_call.1} parent=1 // pred_check
      _
    $region19: #{tpu_custom_call.1} parent=1 // pred_check_branch
      %52 = sbr.rel (0) target = $region21
    $region20: #{tpu_custom_call.1} parent=1 // pred_region
      _
    $region21: #{tpu_custom_call.1} parent=1 // pred_fallthru
      _
    // Predicated region
    $region22: #{tpu_custom_call.1} parent=1 // pred_check
      _
    $region23: #{tpu_custom_call.1} parent=1 // pred_check_branch
      %54 = sbr.rel (0) target = $region25
    $region24: #{tpu_custom_call.1} parent=1 // pred_region
      %55 = dma.done [#allocation3], 256
    $region25: #{tpu_custom_call.1} parent=1 // pred_fallthru
      _
    // Predicated region
    $region26: #{tpu_custom_call.1} parent=1 // pred_check
      _
    $region27: #{tpu_custom_call.1} parent=1 // pred_check_branch
      %57 = sbr.rel (0) target = $region29
    $region28: #{tpu_custom_call.1} parent=1 // pred_region
      %58 = dma.done [#allocation6], 256
    $region29: #{tpu_custom_call.1} parent=1 // pred_fallthru
      _
    // Predicated region
    $region30: #{tpu_custom_call.1} parent=1 // pred_check
      _
    $region31: #{tpu_custom_call.1} parent=1 // pred_check_branch
      %60 = sbr.rel (0) target = $region33
    $region32: #{tpu_custom_call.1} parent=1 // pred_region
      %61 = dma.done [#allocation6], 256
    $region33: #{tpu_custom_call.1} parent=1 // pred_fallthru
      _
    %v62 = vld [vmem:[#allocation2] sm:$0xff]
    %v63 = vld [vmem:[#allocation2 + $0x8] sm:$0xff]
    %v64 = vld [vmem:[#allocation5] sm:$0xff]
    %v65 = vld [vmem:[#allocation5 + $0x8] sm:$0xff]
    %v66 = vld [vmem:[%s2] sm:$0x1]
    %v68 = vlaneseq
    %v69 = vshrl.u32 %v68, 7
    %v70 = vsub.s32 0, %v69
    %v71 = vrot.slane %v66, %v70
    %vm73 = vcmask 130048
    %v75 = vsel %vm73, %v62, 0
    %v78 = vsel %vm73, %v63, 0
    %80 = vmatprep.subr.mxu0 0.0
    %81 = vmatpush1.msra.mxu0 %v64
    %82 = vmatprep.subr.mxu0 0.0
    %83 = vmatpush1.msra.mxu0 %v65
    %84 = vmatprep.subr.mxu0 0.0
    %85 = vmatpush1.msra.mxu0 0.0
    %86 = vmatprep.subr.mxu0 0.0
    %87 = vmatpush1.msra.mxu0 0.0
    %88 = vmatprep.subr.mxu0 0.0
    %89 = vmatpush1.msra.mxu0 0.0
    %90 = vmatprep.subr.mxu0 0.0
    %91 = vmatpush1.msra.mxu0 0.0
    %92 = vmatprep.subr.mxu0 0.0
    %93 = vmatpush1.msra.mxu0 0.0
    %94 = vmatprep.subr.mxu0 0.0
    %95 = vmatpush1.msra.mxu0 0.0
    %96 = vmatprep.subr.mxu0 0.0
    %97 = vmatpush1.msra.mxu0 0.0
    %98 = vmatprep.subr.mxu0 0.0
    %99 = vmatpush1.msra.mxu0 0.0
    %100 = vmatprep.subr.mxu0 0.0
    %101 = vmatpush1.msra.mxu0 0.0
    %102 = vmatprep.subr.mxu0 0.0
    %103 = vmatpush1.msra.mxu0 0.0
    %104 = vmatprep.subr.mxu0 0.0
    %105 = vmatpush1.msra.mxu0 0.0
    %106 = vmatprep.subr.mxu0 0.0
    %107 = vmatpush1.msra.mxu0 0.0
    %108 = vmatprep.subr.mxu0 0.0
    %109 = vmatpush1.msra.mxu0 0.0
    %110 = vmatprep.subr.mxu0 0.0
    %111 = vmatpush1.msra.mxu0 0.0
    %112 = vmatprep.subr.mxu0 0.0
    %113 = vmatpush1.msra.mxu0 0.0
    %114 = vmatprep.subr.mxu0 0.0
    %115 = vmatpush1.msra.mxu0 0.0
    %116 = vmatprep.subr.mxu0 0.0
    %117 = vmatpush1.msra.mxu0 0.0
    %118 = vmatprep.subr.mxu0 0.0
    %119 = vmatpush1.msra.mxu0 0.0
    %120 = vmatprep.subr.mxu0 0.0
    %121 = vmatpush1.msra.mxu0 0.0
    %122 = vmatprep.subr.mxu0 0.0
    %123 = vmatpush1.msra.mxu0 0.0
    %124 = vmatprep.subr.mxu0 0.0
    %125 = vmatpush1.msra.mxu0 0.0
    %126 = vmatprep.subr.mxu0 0.0
    %127 = vmatpush1.msra.mxu0 0.0
    %128 = vmatprep.subr.mxu0 0.0
    %129 = vmatpush1.msra.mxu0 0.0
    %130 = vmatprep.subr.mxu0 0.0
    %131 = vmatpush1.msra.mxu0 0.0
    %132 = vmatprep.subr.mxu0 0.0
    %133 = vmatpush1.msra.mxu0 0.0
    %134 = vmatprep.subr.mxu0 0.0
    %135 = vmatpush1.msra.mxu0 0.0
    %136 = vmatprep.subr.mxu0 0.0
    %137 = vmatpush1.msra.mxu0 0.0
    %138 = vmatprep.subr.mxu0 0.0
    %139 = vmatpush1.msra.mxu0 0.0
    %140 = vmatprep.subr.mxu0 0.0
    %141 = vmatpush1.msra.mxu0 0.0
    %142 = vmatprep.subr.mxu0 0.0
    %143 = vmatpush1.msra.mxu0 0.0
    %144 = vmatprep.mubr.f32.mxu0 0.0
    %145 = vmatmul.mubr.f32.gmra.mrb[0].mxu0 %v75
    %v146 = vpop.f32.mrb[0].mxu0
    %v147 = vadd.f32 %v71, %v146
    %v148 = vpop.f32.mrb[0].mxu0
    %149 = vmatprep.mubr.f32.mxu0 0.0
    %150 = vmatmul.mubr.f32.gmra.mrb[0].mxu0 %v78
    %v151 = vpop.f32.mrb[0].mxu0
    %v152 = vadd.f32 %v71, %v151
    %v153 = vpop.f32.mrb[0].mxu0
    %154 = vdwg.mxu0
    %v155 = vsel %vm73, %v147, 0.0
    %v156 = vsel %vm73, %v152, 0.0
    %v157 = vadd.f32 %v155, %v156
    %v158 = vrot.slane %v157, 4
    %v159 = vadd.f32 %v157, %v158
    %v160 = vrot.slane %v159, 2
    %v161 = vadd.f32 %v159, %v160
    %v162 = vrot.slane %v161, 1
    %v163 = vadd.f32 %v161, %v162
    %v164 = vrcp.pop 16.0
    %v165 = vmul.f32 %v163, %v164
    %v166 = vmul.f32 %v147, %v147
    %v167 = vmul.f32 %v152, %v152
    %v168 = vsel %vm73, %v166, 0.0
    %v169 = vsel %vm73, %v167, 0.0
    %v170 = vadd.f32 %v168, %v169
    %v171 = vrot.slane %v170, 4
    %v172 = vadd.f32 %v170, %v171
    %v173 = vrot.slane %v172, 2
    %v174 = vadd.f32 %v172, %v173
    %v175 = vrot.slane %v174, 1
    %v176 = vadd.f32 %v174, %v175
    %v177 = vmul.f32 %v176, %v164
    %v178 = vmul.f32 %v165, %v165
    %v179 = vsub.f32 %v177, %v178
    %v180 = vmax.f32 %v179, 0.0
    %v181 = vsub.f32 %v147, %v165
    %v182 = vsub.f32 %v152, %v165
    %v183 = vadd.f32 %v180, 1e-05
    %v184 = vrsqrt.pop %v183
    %v185 = vmul.f32 %v181, %v184
    %v186 = vmul.f32 %v182, %v184
    %v187 = vmax.f32 %v185, 0.0
    %v188 = vmax.f32 %v186, 0.0
    %v189 = vld [vmem:[#allocation7] sm:$0xff]
    %v190 = vld [vmem:[#allocation7 + $0x8] sm:$0xff]
    %v191 = vld [vmem:[%s4] sm:$0x1]
    %v193 = vlaneseq
    %v194 = vshrl.u32 %v193, 7
    %v195 = vsub.s32 0, %v194
    %v196 = vrot.slane %v191, %v195
    %v199 = vsel %vm73, %v187, 0
    %v202 = vsel %vm73, %v188, 0
    %204 = vmatprep.subr.mxu0 0.0
    %205 = vmatpush1.msra.mxu0 %v189
    %206 = vmatprep.subr.mxu0 0.0
    %207 = vmatpush1.msra.mxu0 %v190
    %208 = vmatprep.subr.mxu0 0.0
    %209 = vmatpush1.msra.mxu0 0.0
    %210 = vmatprep.subr.mxu0 0.0
    %211 = vmatpush1.msra.mxu0 0.0
    %212 = vmatprep.subr.mxu0 0.0
    %213 = vmatpush1.msra.mxu0 0.0
    %214 = vmatprep.subr.mxu0 0.0
    %215 = vmatpush1.msra.mxu0 0.0
    %216 = vmatprep.subr.mxu0 0.0
    %217 = vmatpush1.msra.mxu0 0.0
    %218 = vmatprep.subr.mxu0 0.0
    %219 = vmatpush1.msra.mxu0 0.0
    %220 = vmatprep.subr.mxu0 0.0
    %221 = vmatpush1.msra.mxu0 0.0
    %222 = vmatprep.subr.mxu0 0.0
    %223 = vmatpush1.msra.mxu0 0.0
    %224 = vmatprep.subr.mxu0 0.0
    %225 = vmatpush1.msra.mxu0 0.0
    %226 = vmatprep.subr.mxu0 0.0
    %227 = vmatpush1.msra.mxu0 0.0
    %228 = vmatprep.subr.mxu0 0.0
    %229 = vmatpush1.msra.mxu0 0.0
    %230 = vmatprep.subr.mxu0 0.0
    %231 = vmatpush1.msra.mxu0 0.0
    %232 = vmatprep.subr.mxu0 0.0
    %233 = vmatpush1.msra.mxu0 0.0
    %234 = vmatprep.subr.mxu0 0.0
    %235 = vmatpush1.msra.mxu0 0.0
    %236 = vmatprep.subr.mxu0 0.0
    %237 = vmatpush1.msra.mxu0 0.0
    %238 = vmatprep.subr.mxu0 0.0
    %239 = vmatpush1.msra.mxu0 0.0
    %240 = vmatprep.subr.mxu0 0.0
    %241 = vmatpush1.msra.mxu0 0.0
    %242 = vmatprep.subr.mxu0 0.0
    %243 = vmatpush1.msra.mxu0 0.0
    %244 = vmatprep.subr.mxu0 0.0
    %245 = vmatpush1.msra.mxu0 0.0
    %246 = vmatprep.subr.mxu0 0.0
    %247 = vmatpush1.msra.mxu0 0.0
    %248 = vmatprep.subr.mxu0 0.0
    %249 = vmatpush1.msra.mxu0 0.0
    %250 = vmatprep.subr.mxu0 0.0
    %251 = vmatpush1.msra.mxu0 0.0
    %252 = vmatprep.subr.mxu0 0.0
    %253 = vmatpush1.msra.mxu0 0.0
    %254 = vmatprep.subr.mxu0 0.0
    %255 = vmatpush1.msra.mxu0 0.0
    %256 = vmatprep.subr.mxu0 0.0
    %257 = vmatpush1.msra.mxu0 0.0
    %258 = vmatprep.subr.mxu0 0.0
    %259 = vmatpush1.msra.mxu0 0.0
    %260 = vmatprep.subr.mxu0 0.0
    %261 = vmatpush1.msra.mxu0 0.0
    %262 = vmatprep.subr.mxu0 0.0
    %263 = vmatpush1.msra.mxu0 0.0
    %264 = vmatprep.subr.mxu0 0.0
    %265 = vmatpush1.msra.mxu0 0.0
    %266 = vmatprep.subr.mxu0 0.0
    %267 = vmatpush1.msra.mxu0 0.0
    %268 = vmatprep.mubr.f32.mxu0 0.0
    %269 = vmatmul.mubr.f32.gmra.mrb[0].mxu0 %v199
    %v270 = vpop.f32.mrb[0].mxu0
    %v271 = vadd.f32 %v196, %v270
    %v272 = vpop.f32.mrb[0].mxu0
    %273 = vmatprep.mubr.f32.mxu0 0.0
    %274 = vmatmul.mubr.f32.gmra.mrb[0].mxu0 %v202
    %v275 = vpop.f32.mrb[0].mxu0
    %v276 = vadd.f32 %v196, %v275
    %v277 = vpop.f32.mrb[0].mxu0
    %278 = vdwg.mxu0
    %v279 = vsel %vm73, %v271, 0.0
    %v280 = vsel %vm73, %v276, 0.0
    %v281 = vadd.f32 %v279, %v280
    %v282 = vrot.slane %v281, 4
    %v283 = vadd.f32 %v281, %v282
    %v284 = vrot.slane %v283, 2
    %v285 = vadd.f32 %v283, %v284
    %v286 = vrot.slane %v285, 1
    %v287 = vadd.f32 %v285, %v286
    %v288 = vmul.f32 %v287, %v164
    %v289 = vmul.f32 %v271, %v271
    %v290 = vmul.f32 %v276, %v276
    %v291 = vsel %vm73, %v289, 0.0
    %v292 = vsel %vm73, %v290, 0.0
    %v293 = vadd.f32 %v291, %v292
    %v294 = vrot.slane %v293, 4
    %v295 = vadd.f32 %v293, %v294
    %v296 = vrot.slane %v295, 2
    %v297 = vadd.f32 %v295, %v296
    %v298 = vrot.slane %v297, 1
    %v299 = vadd.f32 %v297, %v298
    %v300 = vmul.f32 %v299, %v164
    %v301 = vmul.f32 %v288, %v288
    %v302 = vsub.f32 %v300, %v301
    %v303 = vmax.f32 %v302, 0.0
    %v304 = vsub.f32 %v271, %v288
    %v305 = vsub.f32 %v276, %v288
    %v306 = vadd.f32 %v303, 1e-05
    %v307 = vrsqrt.pop %v306
    %v308 = vmul.f32 %v304, %v307
    %v309 = vmul.f32 %v305, %v307
    %v310 = vadd.f32 %v308, %v62
    %v311 = vadd.f32 %v309, %v63
    %v312 = vmax.f32 %v310, 0.0
    %v313 = vmax.f32 %v311, 0.0
    %314 = vst.msk [vmem:[#allocation8] sm:$0xff] %vm73, %v312
    %315 = vst.msk [vmem:[#allocation8 + $0x8] sm:$0xff] %vm73, %v313
    // Predicated region
    $region34: #{tpu_custom_call.1} parent=1 // pred_check
      _
    $region35: #{tpu_custom_call.1} parent=1 // pred_check_branch
      %317 = sbr.rel (0) target = $region37
    $region36: #{tpu_custom_call.1} parent=1 // pred_region
      %s319 = ssub.s32 256, 256
      %320 = vsyncadd [#allocation4], %s319
      %s321 = sshll.u32 [#allocation8], 4
      %s322 = int_to_ptr.vmem [resolvable:$true] %s321
      %327 = dma.vmem_to_hbm [thread:$0]  %s322, 256, %s5, [#allocation4], 128, 128, 8
    $region37: #{tpu_custom_call.1} parent=1 // pred_fallthru
      _
    // Predicated region
    $region38: #{tpu_custom_call.1} parent=1 // pred_check
      _
    $region39: #{tpu_custom_call.1} parent=1 // pred_check_branch
      %329 = sbr.rel (0) target = $region41
    $region40: #{tpu_custom_call.1} parent=1 // pred_region
      %330 = dma.done [#allocation4], 256
    $region41: #{tpu_custom_call.1} parent=1 // pred_fallthru
      _
    %331 = vsyncpa [#allocation3], 1
    %332 = vsyncpa [#allocation6], 1
    %333 = vsyncpa [#allocation4], 1

</llo_original>
